<compile_context>
chip_gen: v7x
topology: tpu7x:2x2x1
jax: 0.10.0
libtpu: 0.0.40
codegen_flags: <defaults>
</compile_context>

<pallas_src>
import functools

import jax
import jax.numpy as jnp
from jax.experimental import pallas as pl
from jax.experimental.pallas import tpu as pltpu

_LANES = 128       # vreg lane width -> slab width (unmasked, lane-dense stores)
_SUBLANES = 8      # f32 sublanes per vreg
_MiB = 1024 * 1024


def _vmem_capacity_bytes():
    """Physical VMEM of the local chip; conservative fallback if unqueryable."""
    try:
        info = pltpu.get_tpu_info()
        for attr in ("vmem_capacity_bytes", "vmem_size_bytes", "vmem_bytes"):
            val = getattr(info, attr, None)
            if val:
                return int(val)
    except Exception:
        pass
    return 128 * _MiB  # v5e / v6e physical


# --------------------------------------------------------------------------
# Kernels
# --------------------------------------------------------------------------
def _centered_block_kernel(x_ref, o_ref, *, inv_n):
    """Small path: whole slab resident in VMEM; mean + subtract, one HBM pass."""
    x = x_ref[...]
    mean = jnp.sum(x, dtype=jnp.float32) * jnp.float32(inv_n)
    o_ref[...] = (x - mean.astype(x.dtype)).astype(o_ref.dtype)


def _partial_sum_kernel(x_ref, psum_ref, *, tile_rows, total_rows, ragged):
    """Tiled pass 1: per-tile lane-dense (8,128) f32 partial sum.

    Each grid step owns its own output block (no resident accumulator), so the
    grid axis is fully parallel.  The cross-lane reduce happens once, in the
    wrapper.  When the last tile is ragged, out-of-range rows (whose block
    padding is unspecified) are zeroed before the reduce.
    """
    x = x_ref[...]
    if ragged:
        base = pl.program_id(0) * tile_rows
        row_ids = jax.lax.broadcasted_iota(jnp.int32, x.shape, 0) + base
        x = jnp.where(row_ids < total_rows, x, jnp.zeros((), x.dtype))
    folded = x.reshape(x.shape[0] // _SUBLANES, _SUBLANES, x.shape[1])
    psum_ref[...] = jnp.sum(folded, axis=0, dtype=jnp.float32)


def _subtract_mean_kernel(mean_ref, x_ref, o_ref):
    """Tiled pass 2: subtract the precomputed global mean from one row tile."""
    mean = mean_ref[0, 0]                       # cheap SMEM scalar read
    x = x_ref[...]
    o_ref[...] = (x - mean.astype(x.dtype)).astype(o_ref.dtype)


# --------------------------------------------------------------------------
# Wrapper
# --------------------------------------------------------------------------
def centered_layer(x, *, single_block_limit_bytes=None, tile_rows=None,
                   donate_input=False):
    """X - X.mean() over all elements (PyTorch CenteredLayer.forward)."""
    orig_shape = x.shape
    dtype = x.dtype
    n = int(x.size)
    itemsize = jnp.dtype(dtype).itemsize

    vmem_cap = _vmem_capacity_bytes()
    if single_block_limit_bytes is None:
        # ~3/8 of physical VMEM: slab + output (2x slab) + headroom still fits.
        single_block_limit_bytes = (vmem_cap * 3) // 8

    # Flatten into a lane-dense (rows, 128) slab.  Reshape is a metadata-only
    # op; a real pad copy only happens when n is not a multiple of 128.
    flat = x.reshape(-1)
    padded = (n % _LANES) != 0
    if padded:
        # TODO(synk): a fully pad-free path for lane-unaligned element counts
        # would need masked flat-index handling; this copy is the only
        # remaining full-array pad and triggers only when n % 128 != 0.
        flat = jnp.pad(flat, (0, _LANES - n % _LANES))
    rows = flat.size // _LANES
    x2d = flat.reshape(rows, _LANES)
    slab_bytes = rows * _LANES * itemsize
    inv_n = 1.0 / n     # divide by the TRUE count (pad zeros add 0 to the sum)

    if slab_bytes <= single_block_limit_bytes or rows < 2 * _SUBLANES:
        # -------- small/medium path: one VMEM block, no grid, 2n HBM traffic
        vmem_limit = int(min(vmem_cap - 8 * _MiB, 2 * slab_bytes + 16 * _MiB))
        out2d = pl.pallas_call(
            functools.partial(_centered_block_kernel, inv_n=inv_n),
            out_shape=jax.ShapeDtypeStruct((rows, _LANES), dtype),
            in_specs=[pl.BlockSpec(memory_space=pltpu.MemorySpace.VMEM)],
            out_specs=pl.BlockSpec(memory_space=pltpu.MemorySpace.VMEM),
            compiler_params=pltpu.CompilerParams(vmem_limit_bytes=vmem_limit),
            cost_estimate=pl.CostEstimate(flops=2 * n, transcendentals=0,
                                          bytes_accessed=2 * slab_bytes),
            input_output_aliases=({0: 0} if donate_input else {}),
        )(x2d)
    else:
        # -------- scalable path: two-pass tiled reduce-then-subtract (3n) ----
        # Generation-aware tile size; keep 4x tile (in+out double-buffered)
        # plus elementwise temporaries inside the explicit VMEM limit.
        tile_bytes = 8 * _MiB if vmem_cap >= 96 * _MiB else 6 * _MiB
        vmem_limit = int(min(vmem_cap - 16 * _MiB, 6 * tile_bytes + 16 * _MiB))

        if tile_rows is not None:
            tr = max(_SUBLANES, (int(tile_rows) // _SUBLANES) * _SUBLANES)
            ragged = (rows % tr) != 0
        else:
            target = tile_bytes // (_LANES * itemsize)
            tr = max(_SUBLANES, (target // _SUBLANES) * _SUBLANES)
            tr = min(tr, max(_SUBLANES, (rows // _SUBLANES) * _SUBLANES))
            # Prefer a tile that divides rows exactly -> no ragged tile, no
            # mask code emitted at all.
            ragged = (rows % tr) != 0
            if ragged:
                for cand in range(tr, max(_SUBLANES, tr // 2) - 1, -_SUBLANES):
                    if rows % cand == 0:
                        tr, ragged = cand, False
                        break

        grid_rows = pl.cdiv(rows, tr)

        # Pass 1: per-tile lane-dense partial sums.  Each step writes its own
        # (8,128) f32 block -> axis is "parallel" (sharded across the 2
        # TensorCores on v7x); no serialized resident accumulator.
        partials = pl.pallas_call(
            functools.partial(_partial_sum_kernel, tile_rows=tr,
                              total_rows=rows, ragged=ragged),
            out_shape=jax.ShapeDtypeStruct((grid_rows * _SUBLANES, _LANES),
                                           jnp.float32),
            grid=(grid_rows,),
            in_specs=[pl.BlockSpec((tr, _LANES), lambda i: (i, 0))],
            out_specs=pl.BlockSpec((_SUBLANES, _LANES), lambda i: (i, 0)),
            compiler_params=pltpu.CompilerParams(
                dimension_semantics=("parallel",),
                vmem_limit_bytes=vmem_limit),
            cost_estimate=pl.CostEstimate(
                flops=n, transcendentals=0,
                bytes_accessed=slab_bytes + grid_rows * _SUBLANES * _LANES * 4),
        )(x2d)

        # One cross-lane reduce + one multiply, total — not per grid step.
        mean2d = (jnp.sum(partials, dtype=jnp.float32)
                  * jnp.float32(inv_n)).reshape(1, 1)

        # Pass 2: subtract the global mean; tiles independent -> "parallel".
        # Output is the unpadded (rows, 128) slab; a ragged boundary block is
        # clipped by Pallas on write-back (no pad / un-pad copies).
        out2d = pl.pallas_call(
            _subtract_mean_kernel,
            out_shape=jax.ShapeDtypeStruct((rows, _LANES), dtype),
            grid=(grid_rows,),
            in_specs=[
                pl.BlockSpec((1, 1), lambda i: (0, 0),
                             memory_space=pltpu.MemorySpace.SMEM),
                pl.BlockSpec((tr, _LANES), lambda i: (i, 0)),
            ],
            out_specs=pl.BlockSpec((tr, _LANES), lambda i: (i, 0)),
            compiler_params=pltpu.CompilerParams(
                dimension_semantics=("parallel",),
                vmem_limit_bytes=vmem_limit),
            cost_estimate=pl.CostEstimate(flops=n, transcendentals=0,
                                          bytes_accessed=2 * slab_bytes),
            input_output_aliases=({1: 0} if donate_input else {}),
        )(mean2d, x2d)

    if padded:
        return out2d.reshape(-1)[:n].reshape(orig_shape)
    return out2d.reshape(orig_shape)


if __name__ == "__main__":
    key = jax.random.PRNGKey(0)
    # NCHW input, consistent with PyTorch conventions.
    x = jax.random.normal(key, (2, 4, 16, 16), dtype=jnp.float32)
    ref = x - jnp.mean(x)

    # Default path for this size: single VMEM block, no grid.
    y = jax.block_until_ready(centered_layer(x))
    assert y.shape == x.shape and y.dtype == x.dtype
    assert jnp.allclose(y, ref, atol=1e-5), "single-block path mismatch"
    assert abs(float(jnp.mean(y))) < 1e-5

    # Force the scalable two-pass tiled path on the same input:
    # (16,128) slab, tile_rows=8 -> 2 row tiles, divides evenly (no mask).
    y_tiled = jax.block_until_ready(
        centered_layer(x, single_block_limit_bytes=0, tile_rows=8))
    assert jnp.allclose(y_tiled, ref, atol=1e-5), "tiled path mismatch"

    # Ragged tiled path: 3840 elems -> 30 rows, tile_rows=8 -> last tile has 6
    # valid rows (exercises the in-kernel iota mask and clipped boundary write).
    x3 = jax.random.normal(jax.random.PRNGKey(1), (3, 5, 16, 16),
                           dtype=jnp.float32)
    y3 = jax.block_until_ready(
        centered_layer(x3, single_block_limit_bytes=0, tile_rows=8))
    assert jnp.allclose(y3, x3 - jnp.mean(x3), atol=1e-5), "ragged path mismatch"

    # Lane-unaligned element count (210): exercises the only remaining pad path.
    x4 = jax.random.normal(jax.random.PRNGKey(2), (2, 3, 7, 5),
                           dtype=jnp.float32)
    y4 = jax.block_until_ready(centered_layer(x4))
    assert jnp.allclose(y4, x4 - jnp.mean(x4), atol=1e-5), "unaligned mismatch"

    print("KERNEL_OK")
</pallas_src>

<mosaic_0001>
module attributes {stable_mosaic.version = 11 : i64} {
  func.func @_centered_block_kernel(%arg0: memref<16x128xf32, #tpu.memory_space<vmem>>, %arg1: memref<16x128xf32, #tpu.memory_space<vmem>>) attributes {dimension_semantics = [], scalar_prefetch = 0 : i64, scratch_operands = 0 : i64, tpu.core_type = #tpu.core_type<tc>} {
    %c0 = arith.constant 0 : index
    %c0_0 = arith.constant 0 : index
    %0 = vector.load %arg0[%c0, %c0_0] : memref<16x128xf32, #tpu.memory_space<vmem>>, vector<16x128xf32>
    %1 = vector.shape_cast %0 : vector<16x128xf32> to vector<1x16x128xf32>
    %cst = arith.constant dense<0.000000e+00> : vector<1xf32>
    %2 = vector.multi_reduction <add>, %1, %cst [1, 2] : vector<1x16x128xf32> to vector<1xf32>
    %3 = vector.shape_cast %2 : vector<1xf32> to vector<1x1x1xf32>
    %4 = vector.extract %3[0, 0, 0] : f32 from vector<1x1x1xf32>
    %cst_1 = arith.constant 4.8828125E-4 : f32
    %5 = arith.mulf %4, %cst_1 : f32
    %6 = vector.broadcast %5 : f32 to vector<16x128xf32>
    %7 = arith.subf %0, %6 : vector<16x128xf32>
    %c0_2 = arith.constant 0 : index
    %c0_3 = arith.constant 0 : index
    %8 = vector.load %arg1[%c0_2, %c0_3] : memref<16x128xf32, #tpu.memory_space<vmem>>, vector<16x128xf32>
    tpu.vector_store %arg1[%c0_2, %c0_3], %7 {strides = array<i32>} : memref<16x128xf32, #tpu.memory_space<vmem>>, vector<16x128xf32>,
    return
  }
}

</mosaic_0001>

<llo_original>
// kernel: tpu_custom_call.1
$region0: #{tpu_custom_call.1}
  #allocation0 [shape = 'u32[]', space=smem, size = 0x4, offset = 0x4, fixed_abs, tag = 'smem constant byte address 0x4 - core index']
  #allocation1 [shape = 'u32[144,128]{1,0:T(1,128)}', space=vmem, size = 0x12000, scoped, tag = 'internal scratch']
  %s0 = inlined_call_operand.hbm [shape: f32[16,128], index: 0, kind: input, shape index: {}]
  %s1 = inlined_call_operand.hbm [shape: f32[16,128], index: 1, kind: output, shape index: {}]
  %s2 = sld [smem:[#allocation0]]
  $region18: #{tpu_custom_call.1} parent=0
    _
  %s4 = ssub.s32 1, %s2
  %s5 = scalar_select 0, %s4, %s2
  $region1: #{tpu_custom_call.1} parent=0
    #allocation2 [shape = 'u8[8192]{0}', space=vmem, size = 0x2000, scoped, tag = 'input window, operand 0, single buffered']
    #allocation3 [shape = 's32[1]{0}', space=sflag, size = 0x4, scoped, tag = 'scoped memory for tpu_custom_call.1']
    #allocation4 [shape = 's32[1]{0}', space=sflag, size = 0x4, scoped, tag = 'scoped memory for tpu_custom_call.1']
    #allocation5 [shape = 'u8[8192]{0}', space=vmem, size = 0x2000, scoped, tag = 'output window, operand 0, single buffered']
    %6 = vsyncpa [#allocation3], 0
    %7 = vsyncpa [#allocation4], 0
    // Predicated region
    $region2: #{tpu_custom_call.1} parent=1 // pred_check
      _
    $region3: #{tpu_custom_call.1} parent=1 // pred_check_branch
      %9 = sbr.rel (0) target = $region5
    $region4: #{tpu_custom_call.1} parent=1 // pred_region
      %s11 = ssub.s32 256, 256
      %12 = vsyncadd [#allocation3], %s11
      %s13 = sshll.u32 [#allocation2], 4
      %s14 = int_to_ptr.vmem [resolvable:$true] %s13
      %19 = dma.hbm_to_vmem [thread:$0]  %s0, 256, %s14, [#allocation3], 128, 128, 8
    $region5: #{tpu_custom_call.1} parent=1 // pred_fallthru
      _
    // Predicated region
    $region6: #{tpu_custom_call.1} parent=1 // pred_check
      _
    $region7: #{tpu_custom_call.1} parent=1 // pred_check_branch
      %21 = sbr.rel (0) target = $region9
    $region8: #{tpu_custom_call.1} parent=1 // pred_region
      %22 = dma.done [#allocation3], 256
    $region9: #{tpu_custom_call.1} parent=1 // pred_fallthru
      _
    %v23 = vld [vmem:[#allocation2] sm:$0xff]
    %v24 = vld [vmem:[#allocation2 + $0x8] sm:$0xff]
    %v25 = vadd.f32 %v23, %v24
    %26 = vadd.xlane.f32.xlu0 %v25
    %v27 = vpop.xlane.xlu0 %26
    %v28 = vrot.slane %v27, 4
    %v29 = vadd.f32 %v27, %v28
    %v30 = vrot.slane %v29, 2
    %v31 = vadd.f32 %v29, %v30
    %v32 = vrot.slane %v31, 1
    %v33 = vadd.f32 %v31, %v32
    %s34 = vtos %v33
    %s35 = smul.f32 %s34, 0.00048828125
    %v36 = vstv %s35
    %v37 = vsub.f32 %v23, %v36
    %v38 = vsub.f32 %v24, %v36
    %39 = vst [vmem:[#allocation5] sm:$0xff] %v37
    %40 = vst [vmem:[#allocation5 + $0x8] sm:$0xff] %v38
    // Predicated region
    $region10: #{tpu_custom_call.1} parent=1 // pred_check
      _
    $region11: #{tpu_custom_call.1} parent=1 // pred_check_branch
      %42 = sbr.rel (0) target = $region13
    $region12: #{tpu_custom_call.1} parent=1 // pred_region
      %s44 = ssub.s32 256, 256
      %45 = vsyncadd [#allocation4], %s44
      %s46 = sshll.u32 [#allocation5], 4
      %s47 = int_to_ptr.vmem [resolvable:$true] %s46
      %52 = dma.vmem_to_hbm [thread:$0]  %s47, 256, %s1, [#allocation4], 128, 128, 8
    $region13: #{tpu_custom_call.1} parent=1 // pred_fallthru
      _
    // Predicated region
    $region14: #{tpu_custom_call.1} parent=1 // pred_check
      _
    $region15: #{tpu_custom_call.1} parent=1 // pred_check_branch
      %54 = sbr.rel (0) target = $region17
    $region16: #{tpu_custom_call.1} parent=1 // pred_region
      %55 = dma.done [#allocation4], 256
    $region17: #{tpu_custom_call.1} parent=1 // pred_fallthru
      _
    %56 = vsyncpa [#allocation3], 1
    %57 = vsyncpa [#allocation4], 1

</llo_original>
